<compile_context>
chip_gen: v7x
topology: tpu7x:2x2x1
jax: 0.10.0
libtpu: 0.0.40
codegen_flags: <defaults>
</compile_context>

<pallas_src>
import jax
import jax.numpy as jnp
from jax.experimental import pallas as pl
from jax.experimental.pallas import tpu as pltpu


# ---------------------------------------------------------------------------
# Kernel: works both grid-less (full-array blocks) and lane-tiled.
#   xT : (1, B)   batch on the 128-lane axis
#   w  : (H, 4)   packed columns [w1 | b1 | w2 | b2@row0]
#   o  : (1, B)
# ---------------------------------------------------------------------------
def mlp_kernel(xT_ref, w_ref, o_ref):
    w = w_ref[...]                      # single (H, 4) load; slices below are static
    w1 = w[:, 0:1]                      # (H, 1)
    b1 = w[:, 1:2]                      # (H, 1)
    w2 = w[:, 2:3]                      # (H, 1)
    b2 = w[0:1, 3:4]                    # (1, 1) scalar bias, broadcasts over lanes

    x = xT_ref[...]                     # (1, B)
    # layer 1: outer-product style broadcast multiply-add + ReLU (pure VPU)
    h = jnp.maximum(w1 * x + b1, 0.0)   # (H, B)
    # layer 2: VPU multiply + sublane (XLU) reduce + bias
    y = jnp.sum(w2 * h, axis=0, keepdims=True) + b2   # (1, B)
    o_ref[...] = y.astype(o_ref.dtype)


# ---------------------------------------------------------------------------
# Wrapper
# ---------------------------------------------------------------------------
def _pack_params(w1, b1, w2, b2, n_hidden):
    """Pack the 4 tiny parameter arrays into one (H, 4) f32 slab (one DMA)."""
    packed = jnp.zeros((n_hidden, 4), jnp.float32)
    packed = packed.at[:, 0].set(w1.reshape(n_hidden).astype(jnp.float32))
    packed = packed.at[:, 1].set(b1.reshape(n_hidden).astype(jnp.float32))
    packed = packed.at[:, 2].set(w2.reshape(n_hidden).astype(jnp.float32))
    packed = packed.at[0, 3].set(b2.reshape(()).astype(jnp.float32))
    return packed


def _cost(n_hidden, n_lanes):
    # layer1: mul+add+relu ~ 3*H*B ; layer2: mul+reduce ~ 2*H*B  -> ~5*H*B flops
    return pl.CostEstimate(
        flops=5 * n_hidden * n_lanes,
        transcendentals=0,
        bytes_accessed=(n_lanes + n_hidden * 4 + n_lanes) * 4,
    )


def net_forward(x, w1, b1, w2, b2, *, tile_b=8192, grid_threshold=2048):
    """x: (batch, 1); w1: (1, H); b1: (H,); w2: (H, 1); b2: (1,) -> (batch, 1)."""
    batch, n_features = x.shape
    n_hidden = w1.shape[1]
    n_output = w2.shape[1]
    assert n_features == 1 and n_output == 1, "kernel specialized for the Net spec"

    packed = _pack_params(w1, b1, w2, b2, n_hidden)
    vmem = pl.BlockSpec(memory_space=pltpu.MemorySpace.VMEM)

    if batch <= grid_threshold:
        # ---- small-batch path: grid-less, everything resident in VMEM ----
        xT = x.reshape(1, batch)                      # metadata-only transpose
        out = pl.pallas_call(
            mlp_kernel,
            out_shape=jax.ShapeDtypeStruct((1, batch), jnp.float32),
            in_specs=[vmem, vmem],                    # full-array blocks (no 128 rule)
            out_specs=vmem,
            cost_estimate=_cost(n_hidden, batch),
        )(xT, packed)
        return out.reshape(batch, 1)                  # metadata-only transpose back

    # ---- large-batch path: lane-tiled parallel grid (VMEM-safe on v7x) ----
    tile_b = max(128, (min(tile_b, batch) // 128) * 128)
    bp = pl.cdiv(batch, tile_b) * tile_b
    xT = jnp.pad(x.reshape(batch), (0, bp - batch)).reshape(1, bp)
    out = pl.pallas_call(
        mlp_kernel,
        out_shape=jax.ShapeDtypeStruct((1, bp), jnp.float32),
        grid=(bp // tile_b,),
        in_specs=[
            pl.BlockSpec((1, tile_b), lambda i: (0, i)),       # batch tile
            pl.BlockSpec((n_hidden, 4), lambda i: (0, 0)),     # weights, resident
        ],
        out_specs=pl.BlockSpec((1, tile_b), lambda i: (0, i)),
        compiler_params=pltpu.CompilerParams(dimension_semantics=("parallel",)),
        cost_estimate=_cost(n_hidden, bp),
    )(xT, packed)
    return out[0, :batch].reshape(batch, 1)


# ---------------------------------------------------------------------------
# Param init (PyTorch nn.Linear default: U(-1/sqrt(fan_in), 1/sqrt(fan_in)))
# Weights stored as (in_features, out_features), i.e. transposed vs. PyTorch.
# ---------------------------------------------------------------------------
def init_linear_params(key, in_features, out_features):
    bound = 1.0 / (in_features ** 0.5)
    kw, kb = jax.random.split(key)
    w = jax.random.uniform(kw, (in_features, out_features), jnp.float32,
                           minval=-bound, maxval=bound)
    b = jax.random.uniform(kb, (out_features,), jnp.float32,
                           minval=-bound, maxval=bound)
    return w, b


def _reference(x, w1, b1, w2, b2):
    return jnp.maximum(x @ w1 + b1[None, :], 0.0) @ w2 + b2[None, :]


if __name__ == "__main__":
    n_features, n_hidden, n_output = 1, 32, 1
    batch = 100  # matches x = torch.unsqueeze(torch.linspace(-1, 1, 100), dim=1)

    key = jax.random.PRNGKey(0)
    k1, k2, k3 = jax.random.split(key, 3)
    w1, b1 = init_linear_params(k1, n_features, n_hidden)
    w2, b2 = init_linear_params(k2, n_hidden, n_output)

    # deterministic input, same as the PyTorch script
    x = jnp.linspace(-1.0, 1.0, batch, dtype=jnp.float32)[:, None]  # (100, 1)

    # small-batch (grid-less) path
    y = net_forward(x, w1, b1, w2, b2)
    jax.block_until_ready(y)
    ref = _reference(x, w1, b1, w2, b2)
    assert y.shape == (batch, n_output)
    assert jnp.allclose(y, ref, atol=1e-5, rtol=1e-5)

    # large-batch (lane-tiled, parallel grid) path, exercised at a small size
    batch_big = 512
    x_big = jax.random.normal(k3, (batch_big, 1), jnp.float32)
    y_big = net_forward(x_big, w1, b1, w2, b2, tile_b=256, grid_threshold=256)
    jax.block_until_ready(y_big)
    ref_big = _reference(x_big, w1, b1, w2, b2)
    assert y_big.shape == (batch_big, n_output)
    assert jnp.allclose(y_big, ref_big, atol=1e-5, rtol=1e-5)

    print("KERNEL_OK")
</pallas_src>

<mosaic_0001>
module attributes {stable_mosaic.version = 11 : i64} {
  func.func @mlp_kernel(%arg0: memref<1x100xf32, #tpu.memory_space<vmem>>, %arg1: memref<32x4xf32, #tpu.memory_space<vmem>>, %arg2: memref<1x100xf32, #tpu.memory_space<vmem>>) attributes {dimension_semantics = [], scalar_prefetch = 0 : i64, scratch_operands = 0 : i64, tpu.core_type = #tpu.core_type<tc>} {
    %c0 = arith.constant 0 : index
    %c0_0 = arith.constant 0 : index
    %0 = vector.load %arg1[%c0, %c0_0] : memref<32x4xf32, #tpu.memory_space<vmem>>, vector<32x4xf32>
    %1 = vector.extract_strided_slice %0 {offsets = [0, 0], sizes = [32, 1], strides = [1, 1]} : vector<32x4xf32> to vector<32x1xf32>
    %2 = vector.extract_strided_slice %0 {offsets = [0, 1], sizes = [32, 1], strides = [1, 1]} : vector<32x4xf32> to vector<32x1xf32>
    %3 = vector.extract_strided_slice %0 {offsets = [0, 2], sizes = [32, 1], strides = [1, 1]} : vector<32x4xf32> to vector<32x1xf32>
    %4 = vector.extract_strided_slice %0 {offsets = [0, 3], sizes = [1, 1], strides = [1, 1]} : vector<32x4xf32> to vector<1x1xf32>
    %c0_1 = arith.constant 0 : index
    %c0_2 = arith.constant 0 : index
    %5 = vector.load %arg0[%c0_1, %c0_2] : memref<1x100xf32, #tpu.memory_space<vmem>>, vector<1x100xf32>
    %6 = vector.broadcast %1 : vector<32x1xf32> to vector<32x100xf32>
    %7 = vector.broadcast %5 : vector<1x100xf32> to vector<32x100xf32>
    %8 = arith.mulf %6, %7 : vector<32x100xf32>
    %9 = vector.broadcast %2 : vector<32x1xf32> to vector<32x100xf32>
    %10 = arith.addf %8, %9 : vector<32x100xf32>
    %cst = arith.constant 0.000000e+00 : f32
    %11 = vector.broadcast %cst : f32 to vector<32x100xf32>
    %12 = arith.maximumf %10, %11 : vector<32x100xf32>
    %13 = vector.broadcast %3 : vector<32x1xf32> to vector<32x100xf32>
    %14 = arith.mulf %13, %12 : vector<32x100xf32>
    %cst_3 = arith.constant dense<0.000000e+00> : vector<100xf32>
    %15 = vector.multi_reduction <add>, %14, %cst_3 [0] : vector<32x100xf32> to vector<100xf32>
    %16 = vector.shape_cast %15 : vector<100xf32> to vector<1x100xf32>
    %17 = vector.broadcast %4 : vector<1x1xf32> to vector<1x100xf32>
    %18 = arith.addf %16, %17 : vector<1x100xf32>
    %c0_4 = arith.constant 0 : index
    %c0_5 = arith.constant 0 : index
    %19 = vector.load %arg2[%c0_4, %c0_5] : memref<1x100xf32, #tpu.memory_space<vmem>>, vector<1x100xf32>
    tpu.vector_store %arg2[%c0_4, %c0_5], %18 {strides = array<i32>} : memref<1x100xf32, #tpu.memory_space<vmem>>, vector<1x100xf32>,
    return
  }
}

</mosaic_0001>

<llo_original>
// kernel: tpu_custom_call.1
$region0: #{tpu_custom_call.1}
  #allocation0 [shape = 'u32[]', space=smem, size = 0x4, offset = 0x4, fixed_abs, tag = 'smem constant byte address 0x4 - core index']
  #allocation1 [shape = 'u32[144,128]{1,0:T(1,128)}', space=vmem, size = 0x12000, scoped, tag = 'internal scratch']
  %s0 = inlined_call_operand.vmem [shape: f32[1,100], index: 0, kind: input, shape index: {}]
  %s1 = inlined_call_operand.vmem [shape: f32[32,4], index: 1, kind: input, shape index: {}]
  %s2 = inlined_call_operand.hbm [shape: f32[1,100], index: 2, kind: output, shape index: {}]
  %s3 = sld [smem:[#allocation0]]
  $region18: #{tpu_custom_call.1} parent=0
    _
  %s5 = ssub.s32 1, %s3
  %s6 = scalar_select 0, %s5, %s3
  $region1: #{tpu_custom_call.1} parent=0
    #allocation2 [shape = 'u8[512]{0}', space=vmem, size = 0x400, scoped, tag = 'output window, operand 0, single buffered']
    #allocation3 [shape = 's32[1]{0}', space=sflag, size = 0x4, scoped, tag = 'scoped memory for tpu_custom_call.1']
    %7 = vsyncpa [#allocation3], 0
    // Predicated region
    $region2: #{tpu_custom_call.1} parent=1 // pred_check
      _
    $region3: #{tpu_custom_call.1} parent=1 // pred_check_branch
      %9 = sbr.rel (0) target = $region5
    $region4: #{tpu_custom_call.1} parent=1 // pred_region
      _
    $region5: #{tpu_custom_call.1} parent=1 // pred_fallthru
      _
    // Predicated region
    $region6: #{tpu_custom_call.1} parent=1 // pred_check
      _
    $region7: #{tpu_custom_call.1} parent=1 // pred_check_branch
      %11 = sbr.rel (0) target = $region9
    $region8: #{tpu_custom_call.1} parent=1 // pred_region
      _
    $region9: #{tpu_custom_call.1} parent=1 // pred_fallthru
      _
    %v12 = vld [vmem:[%s1] sm:$0xff]
    %v13 = vld [vmem:[%s1 + $0x8] sm:$0xff]
    %v14 = vld [vmem:[%s1 + $0x10] sm:$0xff]
    %v15 = vld [vmem:[%s1 + $0x18] sm:$0xff]
    %v16 = vld [vmem:[%s0] sm:$0x1]
    %18 = vset.pattern.permute.xlu0 0
    %19 = vperm.xlu0 %18, %v12
    %v20 = vpop.permute.xlu0 %19
    %23 = vset.pattern.permute.xlu0 0
    %24 = vperm.xlu0 %23, %v13
    %v25 = vpop.permute.xlu0 %24
    %28 = vset.pattern.permute.xlu0 0
    %29 = vperm.xlu0 %28, %v14
    %v30 = vpop.permute.xlu0 %29
    %33 = vset.pattern.permute.xlu0 0
    %34 = vperm.xlu0 %33, %v15
    %v35 = vpop.permute.xlu0 %34
    %v38 = vlaneseq
    %v39 = vshrl.u32 %v38, 7
    %v40 = vsub.s32 0, %v39
    %v41 = vrot.slane %v16, %v40
    %v43 = vmul.f32 %v20, %v41
    %v44 = vmul.f32 %v25, %v41
    %v45 = vmul.f32 %v30, %v41
    %v46 = vmul.f32 %v35, %v41
    %47 = vset.pattern.permute.xlu0 1
    %48 = vperm.xlu0 %47, %v12
    %v49 = vpop.permute.xlu0 %48
    %51 = vset.pattern.permute.xlu0 1
    %52 = vperm.xlu0 %51, %v13
    %v53 = vpop.permute.xlu0 %52
    %55 = vset.pattern.permute.xlu0 1
    %56 = vperm.xlu0 %55, %v14
    %v57 = vpop.permute.xlu0 %56
    %59 = vset.pattern.permute.xlu0 1
    %60 = vperm.xlu0 %59, %v15
    %v61 = vpop.permute.xlu0 %60
    %v63 = vadd.f32 %v43, %v49
    %v64 = vadd.f32 %v44, %v53
    %v65 = vadd.f32 %v45, %v57
    %v66 = vadd.f32 %v46, %v61
    %v67 = vmax.f32 %v63, 0.0
    %v68 = vmax.f32 %v64, 0.0
    %v69 = vmax.f32 %v65, 0.0
    %v70 = vmax.f32 %v66, 0.0
    %71 = vset.pattern.permute.xlu0 2
    %72 = vperm.xlu0 %71, %v12
    %v73 = vpop.permute.xlu0 %72
    %75 = vset.pattern.permute.xlu0 2
    %76 = vperm.xlu0 %75, %v13
    %v77 = vpop.permute.xlu0 %76
    %79 = vset.pattern.permute.xlu0 2
    %80 = vperm.xlu0 %79, %v14
    %v81 = vpop.permute.xlu0 %80
    %83 = vset.pattern.permute.xlu0 2
    %84 = vperm.xlu0 %83, %v15
    %v85 = vpop.permute.xlu0 %84
    %v87 = vmul.f32 %v73, %v67
    %v88 = vmul.f32 %v77, %v68
    %v89 = vmul.f32 %v81, %v69
    %v90 = vmul.f32 %v85, %v70
    %vm91 = vcmask 818176
    %v92 = vsel %vm91, %v87, 0.0
    %v93 = vsel %vm91, %v88, 0.0
    %v94 = vadd.f32 %v92, %v93
    %v95 = vsel %vm91, %v89, 0.0
    %v96 = vadd.f32 %v94, %v95
    %v97 = vsel %vm91, %v90, 0.0
    %v98 = vadd.f32 %v96, %v97
    %v99 = vrot.slane %v98, 4
    %v100 = vadd.f32 %v98, %v99
    %v101 = vrot.slane %v100, 2
    %v102 = vadd.f32 %v100, %v101
    %v103 = vrot.slane %v102, 1
    %v104 = vadd.f32 %v102, %v103
    %105 = vset.pattern.permute.xlu0 3
    %106 = vperm.xlu0 %105, %v12
    %v107 = vpop.permute.xlu0 %106
    %v109 = vadd.f32 %v104, %v107
    %vm110 = vcmask 811008
    %111 = vst.msk [vmem:[#allocation2] sm:$0x1] %vm110, %v109
    // Predicated region
    $region10: #{tpu_custom_call.1} parent=1 // pred_check
      _
    $region11: #{tpu_custom_call.1} parent=1 // pred_check_branch
      %113 = sbr.rel (0) target = $region13
    $region12: #{tpu_custom_call.1} parent=1 // pred_region
      %s115 = ssub.s32 16, 16
      %116 = vsyncadd [#allocation3], %s115
      %s118 = sshll.u32 [#allocation2], 4
      %s119 = int_to_ptr.vmem [resolvable:$true] %s118
      %121 = dma.vmem_to_hbm [thread:$0]  %s119, 16, %s2, [#allocation3]
    $region13: #{tpu_custom_call.1} parent=1 // pred_fallthru
      _
    // Predicated region
    $region14: #{tpu_custom_call.1} parent=1 // pred_check
      _
    $region15: #{tpu_custom_call.1} parent=1 // pred_check_branch
      %123 = sbr.rel (0) target = $region17
    $region16: #{tpu_custom_call.1} parent=1 // pred_region
      %124 = dma.done [#allocation3], 16
    $region17: #{tpu_custom_call.1} parent=1 // pred_fallthru
      _
    %125 = vsyncpa [#allocation3], 1

</llo_original>
